<compile_context>
chip_gen: v6e
topology: v6e:2x2x1
jax: 0.10.0
libtpu: 0.0.40
codegen_flags: <defaults>
</compile_context>

<pallas_src>
import jax
import jax.numpy as jnp
from jax import lax
from jax.experimental import pallas as pl
from jax.experimental.pallas import tpu as pltpu


def _pe_table_kernel(freqs2_ref, pe_ref):
    """Build one row-tile of the positional-encoding table.

    freqs2_ref : (1, D)     f32  -- [freqs, freqs] (frequency for every column)
    pe_ref     : (t_tile,D) f32  -- pe[t, j] = sin(t*f_j) for j <  D//2
                                              cos(t*f_j) for j >= D//2
    """
    t_tile, d = pe_ref.shape
    h = d // 2
    t0 = pl.program_id(0) * t_tile
    row = lax.broadcasted_iota(jnp.int32, (t_tile, d), 0)
    col = lax.broadcasted_iota(jnp.int32, (t_tile, d), 1)
    pos = (t0 + row).astype(jnp.float32)
    sinusoid = pos * freqs2_ref[...]              # (1, D) broadcasts over rows
    # Single full-width aligned store; no lane-axis concatenate in the kernel.
    pe_ref[...] = jnp.where(col < h, jnp.sin(sinusoid), jnp.cos(sinusoid))


def _add_pe_kernel(pe_ref, x_ref, o_ref):
    """out = x + pe.  pe tile is resident across the (innermost) batch axis."""
    # Accumulate in f32, cast once (correctness note from the review).
    o_ref[...] = (x_ref[...].astype(jnp.float32) + pe_ref[...]).astype(o_ref.dtype)


def fourier_positional_encoding(x, freqs, *, max_row_tile=2048, max_t_tile=512):
    """x: (B, T, D); freqs: (D//2,) -> (B, T, D) with sinusoidal PE added."""
    B, T, D = x.shape
    if D % 2 != 0:
        raise ValueError("embed_dim must be even")
    H = D // 2
    freqs = freqs.reshape(H).astype(jnp.float32)

    # ---- Step 1: build the (T, D) PE table once (not once per batch). ----
    freqs2 = jnp.concatenate([freqs, freqs]).reshape(1, D)   # per-column frequency
    t_tile = T if T <= max_t_tile else max_t_tile            # 512 % 8 == 0
    pe = pl.pallas_call(
        _pe_table_kernel,
        out_shape=jax.ShapeDtypeStruct((T, D), jnp.float32),
        grid=(pl.cdiv(T, t_tile),),
        in_specs=[pl.BlockSpec((1, D), lambda t: (0, 0))],
        out_specs=pl.BlockSpec((t_tile, D), lambda t: (t, 0)),
        compiler_params=pltpu.CompilerParams(
            dimension_semantics=("parallel",)),
    )(freqs2)

    # ---- Step 2: lane-dense presentation of x / pe for the add kernel. ----
    if D % 128 == 0:
        rows, cols = T, D                       # already lane aligned
        x2, pe2 = x, pe
    elif (T * D) % 128 == 0:
        rows, cols = (T * D) // 128, 128        # flatten -> unmasked stores
        x2 = x.reshape(B, rows, cols)
        pe2 = pe.reshape(rows, cols)
    else:
        rows, cols = T, D                       # fallback: masked stores
        x2, pe2 = x, pe

    r_tile = rows if rows <= max_row_tile else max_row_tile  # 2048 % 8 == 0

    out2 = pl.pallas_call(
        _add_pe_kernel,
        out_shape=jax.ShapeDtypeStruct((B, rows, cols), x.dtype),
        # Batch is the innermost grid axis and pe's index_map ignores it, so
        # the pe tile is DMA'd once per row-tile and stays resident in VMEM.
        grid=(pl.cdiv(rows, r_tile), B),
        in_specs=[
            pl.BlockSpec((r_tile, cols), lambda r, b: (r, 0)),            # pe
            pl.BlockSpec((None, r_tile, cols), lambda r, b: (b, r, 0)),   # x
        ],
        out_specs=pl.BlockSpec((None, r_tile, cols), lambda r, b: (b, r, 0)),
        compiler_params=pltpu.CompilerParams(
            dimension_semantics=("parallel", "parallel"),
            # Explicit, generation-safe VMEM budget; the tiles above use
            # well under 8 MiB with double buffering on v5e/v6e/v7x.
            vmem_limit_bytes=32 * 1024 * 1024),
    )(pe2, x2)

    return out2.reshape(B, T, D)


def _reference(x, freqs):
    B, T, D = x.shape
    pos = jnp.arange(T, dtype=jnp.float32)[:, None]             # (T, 1)
    sinusoid = pos * freqs[None, :]                             # (T, D//2)
    pe = jnp.concatenate([jnp.sin(sinusoid), jnp.cos(sinusoid)], axis=-1)
    return x + pe[None, :, :]


if __name__ == "__main__":
    # module parameters (deterministic, matching __init__)
    embed_dim = 32
    freqs = jnp.power(
        10000.0, -jnp.arange(0, embed_dim, 2, dtype=jnp.float32) / embed_dim
    )  # (embed_dim//2,)

    # small example input consistent with forward(): (batch, time_steps, embed_dim)
    B, T = 2, 8
    key = jax.random.PRNGKey(0)
    x = jax.random.normal(key, (B, T, embed_dim), dtype=jnp.float32)

    out = fourier_positional_encoding(x, freqs)
    out = jax.block_until_ready(out)

    ref = _reference(x, freqs)
    assert out.shape == (B, T, embed_dim)
    assert jnp.allclose(out, ref, atol=1e-5, rtol=1e-5)

    print("KERNEL_OK")
</pallas_src>

<mosaic_0001>
module attributes {stable_mosaic.version = 11 : i64} {
  func.func @_pe_table_kernel(%arg0: i32, %arg1: memref<1x32xf32, #tpu.memory_space<vmem>>, %arg2: memref<8x32xf32, #tpu.memory_space<vmem>>) attributes {dimension_semantics = [#tpu.dimension_semantics<parallel>], iteration_bounds = array<i64: 1>, scalar_prefetch = 0 : i64, scratch_operands = 0 : i64, tpu.core_type = #tpu.core_type<tc>, window_params = [{pipeline_mode = #tpu.pipeline_mode<synchronous>, transform_indices = @transform_0, window_bounds = array<i64: 1, 32>}, {transform_indices = @transform_1, window_bounds = array<i64: 8, 32>}]} {
    %c8_i32 = arith.constant 8 : i32
    %0 = arith.muli %arg0, %c8_i32 : i32
    %1 = tpu.iota {dimensions = array<i32: 0>} : vector<8x32xi32>
    %2 = tpu.iota {dimensions = array<i32: 1>} : vector<8x32xi32>
    %3 = vector.broadcast %0 : i32 to vector<8x32xi32>
    %4 = arith.addi %3, %1 : vector<8x32xi32>
    %5 = arith.sitofp %4 : vector<8x32xi32> to vector<8x32xf32>
    %c0 = arith.constant 0 : index
    %c0_0 = arith.constant 0 : index
    %6 = vector.load %arg1[%c0, %c0_0] : memref<1x32xf32, #tpu.memory_space<vmem>>, vector<1x32xf32>
    %7 = vector.broadcast %6 : vector<1x32xf32> to vector<8x32xf32>
    %8 = arith.mulf %5, %7 : vector<8x32xf32>
    %c16_i32 = arith.constant 16 : i32
    %9 = vector.broadcast %c16_i32 : i32 to vector<8x32xi32>
    %10 = arith.cmpi slt, %2, %9 : vector<8x32xi32>
    %11 = math.sin %8 : vector<8x32xf32>
    %12 = math.cos %8 : vector<8x32xf32>
    %13 = arith.select %10, %11, %12 : vector<8x32xi1>, vector<8x32xf32>
    %c0_1 = arith.constant 0 : index
    %c0_2 = arith.constant 0 : index
    %14 = vector.load %arg2[%c0_1, %c0_2] : memref<8x32xf32, #tpu.memory_space<vmem>>, vector<8x32xf32>
    tpu.vector_store %arg2[%c0_1, %c0_2], %13 {strides = array<i32>} : memref<8x32xf32, #tpu.memory_space<vmem>>, vector<8x32xf32>,
    return
  }
  func.func @transform_0(%arg0: i32) -> (i32, i32) {
    %c0_i32 = arith.constant 0 : i32
    %c0_i32_0 = arith.constant 0 : i32
    %c0_i32_1 = arith.constant 0 : i32
    return %c0_i32, %c0_i32_0 : i32, i32
  }
  func.func @transform_1(%arg0: i32) -> (i32, i32) {
    %c0_i32 = arith.constant 0 : i32
    %c0_i32_0 = arith.constant 0 : i32
    return %arg0, %c0_i32 : i32, i32
  }
}

</mosaic_0001>

<llo_original>
// kernel: tpu_custom_call.1
$region0: #{tpu_custom_call.1}
  #allocation0 [shape = 'u32[]', space=smem, size = 0x4, offset = 0x4, fixed_abs, tag = 'smem constant byte address 0x4 - core index']
  #allocation1 [shape = 'u32[144,128]{1,0:T(1,128)}', space=vmem, size = 0x12000, scoped, tag = 'internal scratch']
  %s0 = inlined_call_operand.hbm [shape: f32[1,32], index: 0, kind: input, shape index: {}]
  %s1 = inlined_call_operand.hbm [shape: f32[8,32], index: 1, kind: output, shape index: {}]
  %s2 = sld [smem:[#allocation0]]
  $region18: #{tpu_custom_call.1} parent=0
    _
  %s4 = ssub.s32 1, %s2
  %s5 = scalar_select 0, %s4, %s2
  $region1: #{tpu_custom_call.1} parent=0
    #allocation2 [shape = 'u8[512]{0}', space=vmem, size = 0x400, scoped, tag = 'input window, operand 0, single buffered']
    #allocation3 [shape = 's32[1]{0}', space=sflag, size = 0x4, scoped, tag = 'scoped memory for tpu_custom_call.1']
    #allocation4 [shape = 's32[1]{0}', space=sflag, size = 0x4, scoped, tag = 'scoped memory for tpu_custom_call.1']
    #allocation5 [shape = 'u8[4096]{0}', space=vmem, size = 0x1000, scoped, tag = 'output window, operand 0, single buffered']
    %6 = vsyncpa [#allocation3], 0
    %7 = vsyncpa [#allocation4], 0
    // Predicated region
    $region2: #{tpu_custom_call.1} parent=1 // pred_check
      _
    $region3: #{tpu_custom_call.1} parent=1 // pred_check_branch
      %9 = sbr.rel (0) target = $region5
    $region4: #{tpu_custom_call.1} parent=1 // pred_region
      %s11 = ssub.s32 16, 16
      %12 = vsyncadd [#allocation3], %s11
      %s14 = sshll.u32 [#allocation2], 4
      %s15 = int_to_ptr.vmem [resolvable:$true] %s14
      %17 = dma.hbm_to_vmem [thread:$0]  %s0, 16, %s15, [#allocation3]
    $region5: #{tpu_custom_call.1} parent=1 // pred_fallthru
      _
    // Predicated region
    $region6: #{tpu_custom_call.1} parent=1 // pred_check
      _
    $region7: #{tpu_custom_call.1} parent=1 // pred_check_branch
      %19 = sbr.rel (0) target = $region9
    $region8: #{tpu_custom_call.1} parent=1 // pred_region
      %20 = dma.done [#allocation3], 16
    $region9: #{tpu_custom_call.1} parent=1 // pred_fallthru
      _
    %s21 = smul.u32 0, 8
    %v22 = vlaneseq
    %v23 = vshrl.u32 %v22, 7
    %v24 = vlaneseq
    %v25 = vand.u32 %v24, 127
    %v26 = vstv %s21
    %v27 = vadd.s32 %v26, %v23
    %v28 = vcvt.s32.f32 %v27
    %v29 = vld [vmem:[#allocation2] sm:$0x1]
    %v31 = vlaneseq
    %v32 = vshrl.u32 %v31, 7
    %v33 = vsub.s32 0, %v32
    %v34 = vrot.slane %v29, %v33
    %v36 = vmul.f32 %v28, %v34
    %vm37 = vcmp.lt.s32.totalorder %v25, 16
    %v38 = vand.u32 2147483647, %v36
    %vm39 = vcmp.le.f32.partialorder %v38, 0.7853982
    %vm40 = vcmp.lt.s32.totalorder %v36, 0
    %v41 = vand.u32 %v36, 2139095040
    %v42 = vshrl.u32 %v41, 23
    %v43 = vsub.s32 %v42, 127
    %v44 = vand.u32 2147483647, %v36
    %v45 = vand.u32 %v44, 8388607
    %v46 = vor.u32 %v45, 8388608
    %v47 = vsub.s32 0, %v46
    %v48 = vadd.s32 %v43, 1
    %vm49 = vcmp.gt.s32.totalorder %v48, 0
    %v50 = vsel %vm49, %v48, 0
    %v51 = vshrl.u32 %v50, 5
    %v52 = vand.u32 %v50, 31
    %v53 = vsub.s32 32, %v52
    %v54 = vshrl.u32 683565275, %v53
    %v55 = vshll.u32 683565275, %v52
    %v56 = vshrl.u32 2475754826, %v53
    %v57 = vor.u32 %v55, %v56
    %v58 = vshll.u32 2475754826, %v52
    %v59 = vshrl.u32 2131351028, %v53
    %v60 = vor.u32 %v58, %v59
    %v61 = vshll.u32 2131351028, %v52
    %v62 = vshrl.u32 2102212464, %v53
    %v63 = vor.u32 %v61, %v62
    %v64 = vshll.u32 2102212464, %v52
    %v65 = vshrl.u32 920167782, %v53
    %v66 = vor.u32 %v64, %v65
    %v67 = vshll.u32 920167782, %v52
    %v68 = vshrl.u32 1326507024, %v53
    %v69 = vor.u32 %v67, %v68
    %vm70 = vcmp.lt.s32.totalorder %v51, 1
    %vm71 = vcmp.lt.s32.totalorder %v51, 2
    %vm72 = vcmp.lt.s32.totalorder %v51, 3
    %vm73 = vcmp.lt.s32.totalorder %v51, 4
    %v74 = vsel %vm70, %v54, %v57
    %v75 = vsel %vm73, %v63, 2102212464
    %v76 = vsel %vm72, %v60, %v75
    %v77 = vsel %vm71, %v74, %v76
    %v78 = vsel %vm70, %v57, %v60
    %v79 = vsel %vm73, %v66, 920167782
    %v80 = vsel %vm72, %v63, %v79
    %v81 = vsel %vm71, %v78, %v80
    %v82 = vsel %vm70, %v60, %v63
    %v83 = vsel %vm73, %v69, 1326507024
    %v84 = vsel %vm72, %v66, %v83
    %v85 = vsel %vm71, %v82, %v84
    %v86 = vshll.u32 %v46, 8
    %v87 = vmul.u32.u64.compose %v86, %v85
    %v88 = vextract.low.u32 %v87
    %v89 = vextract.high.u32 %v87
    %v90 = vmul.u32.u64.compose %v86, %v81
    %v91 = vextract.low.u32 %v90
    %v92 = vextract.high.u32 %v90
    %v93 = vmul.u32 %v86, %v77
    %v94 = vadd.s32 %v89, %v91
    %vm95 = vc.u32 %v89, %v91
    %v96 = vadd.s32 %v92, 1
    %v97 = vsel %vm95, %v96, %v92
    %v98 = vadd.s32 %v93, %v97
    %v99 = vadd.s32 %v98, 536870912
    %v100 = vshrl.u32 %v99, 30
    %v101 = vshll.u32 %v100, 30
    %v102 = vsub.s32 %v98, %v101
    %vm103 = vcmp.lt.s32.totalorder %v102, 0
    %v104 = vsub.s32 0, %v102
    %v105 = vsel %vm103, %v104, %v102
    %v106 = vclz %v105
    %v107 = vsub.s32 %v106, 2
    %vm108 = vcmp.gt.s32.totalorder 0, %v107
    %v109 = vsel %vm108, 0, %v107
    %v110 = vsub.s32 32, %v109
    %v111 = vshll.u32 %v102, %v109
    %v112 = vshrl.u32 %v94, %v110
    %v113 = vor.u32 %v111, %v112
    %v114 = vsub.s32 4294967266, %v109
    %v115 = vadd.s32 %v114, 127
    %v116 = vshll.u32 %v115, 23
    %v117 = vor.u32 4788187, %v116
    %v118 = vand.u32 2147483647, %v117
    %v120 = vcvt.s32.f32 %v113
    %v121 = vmul.f32 %v120, %v118
    %v122 = vxor.u32 %v121, 2147483648
    %v123 = vsel %vm40, %v122, %v121
    %v124 = vsub.s32 4, %v100
    %v125 = vsel %vm40, %v124, %v100
    %v126 = vsel %vm39, %v36, %v123
    %v127 = vsel %vm39, 0, %v125
    %v128 = vcosq.f32.pop %v126
    %v129 = vsinq.f32.pop %v126
    %vm130 = vweird.f32 %v36
    %v131 = vadd.s32 %v127, 3
    %v132 = vand.u32 %v131, 3
    %vm133 = vcmp.lt.s32.totalorder %v132, 2
    %vm134 = vcmp.eq.s32.totalorder %v132, 0
    %v135 = vxor.u32 %v129, 2147483648
    %v136 = vsel %vm134, %v128, %v135
    %vm137 = vcmp.eq.s32.totalorder %v132, 2
    %v138 = vxor.u32 %v128, 2147483648
    %v139 = vsel %vm137, %v138, %v129
    %v140 = vsel %vm133, %v136, %v139
    %v141 = vsel %vm130, nan, %v140
    %v142 = vand.u32 2147483647, %v36
    %vm143 = vcmp.le.f32.partialorder %v142, 0.7853982
    %vm144 = vcmp.lt.s32.totalorder %v36, 0
    %v145 = vand.u32 %v36, 2139095040
    %v146 = vshrl.u32 %v145, 23
    %v147 = vsub.s32 %v146, 127
    %v148 = vand.u32 2147483647, %v36
    %v149 = vand.u32 %v148, 8388607
    %v150 = vor.u32 %v149, 8388608
    %v151 = vsub.s32 0, %v150
    %v152 = vadd.s32 %v147, 1
    %vm153 = vcmp.gt.s32.totalorder %v152, 0
    %v154 = vsel %vm153, %v152, 0
    %v155 = vshrl.u32 %v154, 5
    %v156 = vand.u32 %v154, 31
    %v157 = vsub.s32 32, %v156
    %v158 = vshrl.u32 683565275, %v157
    %v159 = vshll.u32 683565275, %v156
    %v160 = vshrl.u32 2475754826, %v157
    %v161 = vor.u32 %v159, %v160
    %v162 = vshll.u32 2475754826, %v156
    %v163 = vshrl.u32 2131351028, %v157
    %v164 = vor.u32 %v162, %v163
    %v165 = vshll.u32 2131351028, %v156
    %v166 = vshrl.u32 2102212464, %v157
    %v167 = vor.u32 %v165, %v166
    %v168 = vshll.u32 2102212464, %v156
    %v169 = vshrl.u32 920167782, %v157
    %v170 = vor.u32 %v168, %v169
    %v171 = vshll.u32 920167782, %v156
    %v172 = vshrl.u32 1326507024, %v157
    %v173 = vor.u32 %v171, %v172
    %vm174 = vcmp.lt.s32.totalorder %v155, 1
    %vm175 = vcmp.lt.s32.totalorder %v155, 2
    %vm176 = vcmp.lt.s32.totalorder %v155, 3
    %vm177 = vcmp.lt.s32.totalorder %v155, 4
    %v178 = vsel %vm174, %v158, %v161
    %v179 = vsel %vm177, %v167, 2102212464
    %v180 = vsel %vm176, %v164, %v179
    %v181 = vsel %vm175, %v178, %v180
    %v182 = vsel %vm174, %v161, %v164
    %v183 = vsel %vm177, %v170, 920167782
    %v184 = vsel %vm176, %v167, %v183
    %v185 = vsel %vm175, %v182, %v184
    %v186 = vsel %vm174, %v164, %v167
    %v187 = vsel %vm177, %v173, 1326507024
    %v188 = vsel %vm176, %v170, %v187
    %v189 = vsel %vm175, %v186, %v188
    %v190 = vshll.u32 %v150, 8
    %v191 = vmul.u32.u64.compose %v190, %v189
    %v192 = vextract.low.u32 %v191
    %v193 = vextract.high.u32 %v191
    %v194 = vmul.u32.u64.compose %v190, %v185
    %v195 = vextract.low.u32 %v194
    %v196 = vextract.high.u32 %v194
    %v197 = vmul.u32 %v190, %v181
    %v198 = vadd.s32 %v193, %v195
    %vm199 = vc.u32 %v193, %v195
    %v200 = vadd.s32 %v196, 1
    %v201 = vsel %vm199, %v200, %v196
    %v202 = vadd.s32 %v197, %v201
    %v203 = vadd.s32 %v202, 536870912
    %v204 = vshrl.u32 %v203, 30
    %v205 = vshll.u32 %v204, 30
    %v206 = vsub.s32 %v202, %v205
    %vm207 = vcmp.lt.s32.totalorder %v206, 0
    %v208 = vsub.s32 0, %v206
    %v209 = vsel %vm207, %v208, %v206
    %v210 = vclz %v209
    %v211 = vsub.s32 %v210, 2
    %vm212 = vcmp.gt.s32.totalorder 0, %v211
    %v213 = vsel %vm212, 0, %v211
    %v214 = vsub.s32 32, %v213
    %v215 = vshll.u32 %v206, %v213
    %v216 = vshrl.u32 %v198, %v214
    %v217 = vor.u32 %v215, %v216
    %v218 = vsub.s32 4294967266, %v213
    %v219 = vadd.s32 %v218, 127
    %v220 = vshll.u32 %v219, 23
    %v221 = vor.u32 4788187, %v220
    %v222 = vand.u32 2147483647, %v221
    %v224 = vcvt.s32.f32 %v217
    %v225 = vmul.f32 %v224, %v222
    %v226 = vxor.u32 %v225, 2147483648
    %v227 = vsel %vm144, %v226, %v225
    %v228 = vsub.s32 4, %v204
    %v229 = vsel %vm144, %v228, %v204
    %v230 = vsel %vm143, %v36, %v227
    %v231 = vsel %vm143, 0, %v229
    %v232 = vcosq.f32.pop %v230
    %v233 = vsinq.f32.pop %v230
    %vm234 = vweird.f32 %v36
    %v235 = vand.u32 %v231, 3
    %vm236 = vcmp.lt.s32.totalorder %v235, 2
    %vm237 = vcmp.eq.s32.totalorder %v235, 0
    %v238 = vxor.u32 %v233, 2147483648
    %v239 = vsel %vm237, %v232, %v238
    %vm240 = vcmp.eq.s32.totalorder %v235, 2
    %v241 = vxor.u32 %v232, 2147483648
    %v242 = vsel %vm240, %v241, %v233
    %v243 = vsel %vm236, %v239, %v242
    %v244 = vsel %vm234, nan, %v243
    %v245 = vsel %vm37, %v141, %v244
    %vm246 = vcmask 261120
    %247 = vst.msk [vmem:[#allocation5] sm:$0xff] %vm246, %v245
    // Predicated region
    $region10: #{tpu_custom_call.1} parent=1 // pred_check
      _
    $region11: #{tpu_custom_call.1} parent=1 // pred_check_branch
      %249 = sbr.rel (0) target = $region13
    $region12: #{tpu_custom_call.1} parent=1 // pred_region
      %s251 = ssub.s32 128, 128
      %252 = vsyncadd [#allocation4], %s251
      %s254 = sshll.u32 [#allocation5], 4
      %s255 = int_to_ptr.vmem [resolvable:$true] %s254
      %257 = dma.vmem_to_hbm [thread:$0]  %s255, 128, %s1, [#allocation4]
    $region13: #{tpu_custom_call.1} parent=1 // pred_fallthru
      _
    // Predicated region
    $region14: #{tpu_custom_call.1} parent=1 // pred_check
      _
    $region15: #{tpu_custom_call.1} parent=1 // pred_check_branch
      %259 = sbr.rel (0) target = $region17
    $region16: #{tpu_custom_call.1} parent=1 // pred_region
      %260 = dma.done [#allocation4], 128
    $region17: #{tpu_custom_call.1} parent=1 // pred_fallthru
      _
    %261 = vsyncpa [#allocation3], 1
    %262 = vsyncpa [#allocation4], 1

</llo_original>
